<compile_context>
chip_gen: v5e
topology: v5e:2x2
jax: 0.10.0
libtpu: 0.0.40
codegen_flags: <defaults>
</compile_context>

<pallas_src>
import functools

import jax
import jax.numpy as jnp
from jax.experimental import pallas as pl
from jax.experimental.pallas import tpu as pltpu


def _causal_ln_kernel(L_ref, x_ref, w_ref, b_ref, o_ref, sum_ref, sq_ref,
                      *, eps, mm_dtype):
    # L_ref: (tT, tT) ; x_ref: (1, tT, tC) ; w_ref, b_ref: (1, tC)
    # o_ref: (1, tT, tC) ; sum_ref, sq_ref: (1, tC) f32 carries.
    t_idx = pl.program_id(2)

    @pl.when(t_idx == 0)
    def _():  # new (batch, channel-block): reset the causal carry
        sum_ref[...] = jnp.zeros_like(sum_ref)
        sq_ref[...] = jnp.zeros_like(sq_ref)

    x = x_ref[0].astype(jnp.float32)                       # (tT, tC)
    tT, tC = x.shape

    # Fused prefix-sum of [x | x^2] within the tile: one MXU matmul.
    xx = jnp.concatenate([x, x * x], axis=-1).astype(mm_dtype)   # (tT, 2*tC)
    local = jnp.dot(L_ref[...], xx, preferred_element_type=jnp.float32)

    # Add carried totals from previous T-tiles.
    cs = local[:, :tC] + sum_ref[...]                      # (tT, tC)
    cs2 = local[:, tC:] + sq_ref[...]                      # (tT, tC)

    # Update carry from the tile's last cumulative row (exact f32).
    sum_ref[...] = cs[tT - 1:, :]
    sq_ref[...] = cs2[tT - 1:, :]

    # Global causal count for this tile: t_idx*tT + local_t + 1.
    count = (jax.lax.broadcasted_iota(jnp.int32, (tT, 1), 0)
             + t_idx * tT + 1).astype(jnp.float32)         # (tT, 1)
    inv_count = 1.0 / count                                # single tiny divide

    mean = cs * inv_count
    var = cs2 * inv_count - mean * mean
    var = jnp.maximum(var, 0.0)                            # torch.clamp(min=0)

    x_norm = (x - mean) * jax.lax.rsqrt(var + eps)
    out = x_norm * w_ref[...] + b_ref[...]                 # (1, tC) broadcasts
    o_ref[0] = out.astype(o_ref.dtype)


def _pick_block_t(T):
    for cand in (256, 128, 64, 32, 16, 8):
        if T % cand == 0:
            return cand
    return T


def _pick_block_c(C):
    for cand in (512, 384, 256, 128):
        if C % cand == 0:
            return cand
    return C


def causal_layer_norm(x, weight, bias, *, eps=1e-5, channel_last=True,
                      block_t=None, block_c=None):
    """Pallas CausalLayerNorm.

    channel_last=True : x is (B, T, C), weight/bias are (1, 1, C)
    channel_last=False: x is (B, C, T), weight/bias are (1, C, 1)
    """
    if not channel_last:
        # TODO(synk): native (B, C, T) kernel (cumsum along lanes via x @ U)
        # would avoid this extra HBM transpose pass.
        x = jnp.transpose(x, (0, 2, 1))

    B, T, C = x.shape
    if block_t is None:
        block_t = _pick_block_t(T)
    if block_c is None:
        block_c = _pick_block_c(C)
    assert T % block_t == 0 and C % block_c == 0, "tiles must divide T and C"

    mm_dtype = jnp.bfloat16 if x.dtype == jnp.bfloat16 else jnp.float32

    # Lower-triangular ones: L[t, t'] = 1 iff t' <= t (per-tile prefix-sum op).
    row = jax.lax.broadcasted_iota(jnp.int32, (block_t, block_t), 0)
    col = jax.lax.broadcasted_iota(jnp.int32, (block_t, block_t), 1)
    L = (row >= col).astype(mm_dtype)

    w = weight.reshape(1, C).astype(jnp.float32)
    b = bias.reshape(1, C).astype(jnp.float32)

    grid = (B, C // block_c, T // block_t)

    out = pl.pallas_call(
        functools.partial(_causal_ln_kernel, eps=eps, mm_dtype=mm_dtype),
        out_shape=jax.ShapeDtypeStruct((B, T, C), x.dtype),
        grid_spec=pltpu.PrefetchScalarGridSpec(
            num_scalar_prefetch=0,
            grid=grid,
            in_specs=[
                # L: constant block index -> fetched once, never re-DMA'd.
                pl.BlockSpec((block_t, block_t), lambda bi, ci, ti: (0, 0)),
                pl.BlockSpec((1, block_t, block_c),
                             lambda bi, ci, ti: (bi, ti, ci)),
                pl.BlockSpec((1, block_c), lambda bi, ci, ti: (0, ci)),
                pl.BlockSpec((1, block_c), lambda bi, ci, ti: (0, ci)),
            ],
            out_specs=pl.BlockSpec((1, block_t, block_c),
                                   lambda bi, ci, ti: (bi, ti, ci)),
            scratch_shapes=[
                pltpu.VMEM((1, block_c), jnp.float32),   # running sum carry
                pltpu.VMEM((1, block_c), jnp.float32),   # running sum-of-squares
            ],
        ),
        compiler_params=pltpu.CompilerParams(
            dimension_semantics=("parallel", "parallel", "arbitrary"),
            vmem_limit_bytes=48 * 1024 * 1024,
        ),
    )(L, x, w, b)

    if not channel_last:
        out = jnp.transpose(out, (0, 2, 1))
    return out


def _reference(x, weight, bias, eps=1e-5):
    # Pure-JAX reference (channel_last=True semantics), mirrors the torch code.
    B, T, C = x.shape
    cumsum = jnp.cumsum(x, axis=1)
    cumsum_sq = jnp.cumsum(x * x, axis=1)
    count = jnp.arange(1, T + 1, dtype=x.dtype).reshape(1, T, 1)
    mean = cumsum / count
    var = jnp.maximum(cumsum_sq / count - mean * mean, 0.0)
    x_norm = (x - mean) / jnp.sqrt(var + eps)
    return x_norm * weight + bias


if __name__ == "__main__":
    B, T, C = 2, 32, 128
    key = jax.random.PRNGKey(0)
    x = jax.random.normal(key, (B, T, C), dtype=jnp.float32)

    # Deterministic parameter init, matching nn.Parameter(ones/zeros).
    weight = jnp.ones((1, 1, C), dtype=jnp.float32)
    bias = jnp.zeros((1, 1, C), dtype=jnp.float32)

    ref = _reference(x, weight, bias, eps=1e-5)

    # 1) Default tiling (single T block at this size).
    out = causal_layer_norm(x, weight, bias, eps=1e-5, channel_last=True)
    out = jax.block_until_ready(out)
    assert out.shape == (B, T, C)
    assert jnp.allclose(out, ref, atol=1e-4, rtol=1e-4), "mismatch (default tiling)"

    # 2) Forced small T tiles -> exercises the carried prefix across T blocks.
    out_tiled = causal_layer_norm(x, weight, bias, eps=1e-5, channel_last=True,
                                  block_t=8)
    out_tiled = jax.block_until_ready(out_tiled)
    assert jnp.allclose(out_tiled, ref, atol=1e-4, rtol=1e-4), "mismatch (T-tiled)"

    # 3) channel_last=False path: x is (B, C, T), params are (1, C, 1).
    x_cf = jnp.transpose(x, (0, 2, 1))
    w_cf = weight.reshape(1, C, 1)
    b_cf = bias.reshape(1, C, 1)
    out_cf = causal_layer_norm(x_cf, w_cf, b_cf, eps=1e-5, channel_last=False,
                               block_t=8)
    out_cf = jax.block_until_ready(out_cf)
    assert jnp.allclose(jnp.transpose(out_cf, (0, 2, 1)), ref,
                        atol=1e-4, rtol=1e-4), "mismatch (channel_last=False)"

    print("KERNEL_OK")
</pallas_src>

<mosaic_0001>
module attributes {stable_mosaic.version = 11 : i64} {
  func.func @_causal_ln_kernel(%arg0: i32, %arg1: i32, %arg2: i32, %arg3: memref<32x32xf32, #tpu.memory_space<vmem>>, %arg4: memref<1x32x128xf32, #tpu.memory_space<vmem>>, %arg5: memref<1x128xf32, #tpu.memory_space<vmem>>, %arg6: memref<1x128xf32, #tpu.memory_space<vmem>>, %arg7: memref<1x32x128xf32, #tpu.memory_space<vmem>>, %arg8: memref<1x128xf32, #tpu.memory_space<vmem>>, %arg9: memref<1x128xf32, #tpu.memory_space<vmem>>) attributes {dimension_semantics = [#tpu.dimension_semantics<parallel>, #tpu.dimension_semantics<parallel>, #tpu.dimension_semantics<arbitrary>], iteration_bounds = array<i64: 2, 1, 1>, scalar_prefetch = 0 : i64, scratch_operands = 2 : i64, tpu.core_type = #tpu.core_type<tc>, window_params = [{pipeline_mode = #tpu.pipeline_mode<synchronous>, transform_indices = @transform_0, window_bounds = array<i64: 32, 32>}, {transform_indices = @transform_1, window_bounds = array<i64: 1, 32, 128>}, {transform_indices = @transform_2, window_bounds = array<i64: 1, 128>}, {transform_indices = @transform_3, window_bounds = array<i64: 1, 128>}, {transform_indices = @transform_4, window_bounds = array<i64: 1, 32, 128>}]} {
    %c0_i32 = arith.constant 0 : i32
    %0 = arith.cmpi eq, %arg2, %c0_i32 : i32
    %1 = arith.extui %0 : i1 to i32
    %c0_i32_0 = arith.constant 0 : i32
    %2 = arith.cmpi ne, %1, %c0_i32_0 : i32
    scf.if %2 {
      %cst_23 = arith.constant 0.000000e+00 : f32
      %52 = vector.broadcast %cst_23 : f32 to vector<1x128xf32>
      %c0_24 = arith.constant 0 : index
      %c0_25 = arith.constant 0 : index
      %53 = vector.load %arg8[%c0_24, %c0_25] : memref<1x128xf32, #tpu.memory_space<vmem>>, vector<1x128xf32>
      tpu.vector_store %arg8[%c0_24, %c0_25], %52 {strides = array<i32>} : memref<1x128xf32, #tpu.memory_space<vmem>>, vector<1x128xf32>,
      %cst_26 = arith.constant 0.000000e+00 : f32
      %54 = vector.broadcast %cst_26 : f32 to vector<1x128xf32>
      %c0_27 = arith.constant 0 : index
      %c0_28 = arith.constant 0 : index
      %55 = vector.load %arg9[%c0_27, %c0_28] : memref<1x128xf32, #tpu.memory_space<vmem>>, vector<1x128xf32>
      tpu.vector_store %arg9[%c0_27, %c0_28], %54 {strides = array<i32>} : memref<1x128xf32, #tpu.memory_space<vmem>>, vector<1x128xf32>,
    } else {
    }
    %c0 = arith.constant 0 : index
    %c0_1 = arith.constant 0 : index
    %c0_2 = arith.constant 0 : index
    %3 = vector.load %arg4[%c0, %c0_1, %c0_2] : memref<1x32x128xf32, #tpu.memory_space<vmem>>, vector<1x32x128xf32>
    %4 = vector.shape_cast %3 : vector<1x32x128xf32> to vector<32x128xf32>
    %5 = arith.mulf %4, %4 : vector<32x128xf32>
    %6 = tpu.concatenate %4, %5 in 1 : vector<32x128xf32>, vector<32x128xf32> -> vector<32x256xf32>
    %c0_3 = arith.constant 0 : index
    %c0_4 = arith.constant 0 : index
    %7 = vector.load %arg3[%c0_3, %c0_4] : memref<32x32xf32, #tpu.memory_space<vmem>>, vector<32x32xf32>
    %cst = arith.constant dense<0.000000e+00> : vector<32x256xf32>
    %8 = tpu.matmul %7, %6, %cst {dimension_numbers = #tpu.dot_dimension_numbers<[1], [0], [0], [1], [0, 0, 1, 1], [], []>} : vector<32x32xf32>, vector<32x256xf32>, vector<32x256xf32> -> vector<32x256xf32>
    %9 = vector.extract_strided_slice %8 {offsets = [0, 0], sizes = [32, 128], strides = [1, 1]} : vector<32x256xf32> to vector<32x128xf32>
    %c0_5 = arith.constant 0 : index
    %c0_6 = arith.constant 0 : index
    %10 = vector.load %arg8[%c0_5, %c0_6] : memref<1x128xf32, #tpu.memory_space<vmem>>, vector<1x128xf32>
    %11 = vector.broadcast %10 : vector<1x128xf32> to vector<32x128xf32>
    %12 = arith.addf %9, %11 : vector<32x128xf32>
    %13 = vector.extract_strided_slice %8 {offsets = [0, 128], sizes = [32, 128], strides = [1, 1]} : vector<32x256xf32> to vector<32x128xf32>
    %c0_7 = arith.constant 0 : index
    %c0_8 = arith.constant 0 : index
    %14 = vector.load %arg9[%c0_7, %c0_8] : memref<1x128xf32, #tpu.memory_space<vmem>>, vector<1x128xf32>
    %15 = vector.broadcast %14 : vector<1x128xf32> to vector<32x128xf32>
    %16 = arith.addf %13, %15 : vector<32x128xf32>
    %17 = vector.extract_strided_slice %12 {offsets = [31, 0], sizes = [1, 128], strides = [1, 1]} : vector<32x128xf32> to vector<1x128xf32>
    %c0_9 = arith.constant 0 : index
    %c0_10 = arith.constant 0 : index
    %18 = vector.load %arg8[%c0_9, %c0_10] : memref<1x128xf32, #tpu.memory_space<vmem>>, vector<1x128xf32>
    tpu.vector_store %arg8[%c0_9, %c0_10], %17 {strides = array<i32>} : memref<1x128xf32, #tpu.memory_space<vmem>>, vector<1x128xf32>,
    %19 = vector.extract_strided_slice %16 {offsets = [31, 0], sizes = [1, 128], strides = [1, 1]} : vector<32x128xf32> to vector<1x128xf32>
    %c0_11 = arith.constant 0 : index
    %c0_12 = arith.constant 0 : index
    %20 = vector.load %arg9[%c0_11, %c0_12] : memref<1x128xf32, #tpu.memory_space<vmem>>, vector<1x128xf32>
    tpu.vector_store %arg9[%c0_11, %c0_12], %19 {strides = array<i32>} : memref<1x128xf32, #tpu.memory_space<vmem>>, vector<1x128xf32>,
    %21 = tpu.iota {dimensions = array<i32: 0>} : vector<32x1xi32>
    %c32_i32 = arith.constant 32 : i32
    %22 = arith.muli %arg2, %c32_i32 : i32
    %23 = vector.broadcast %22 : i32 to vector<32x1xi32>
    %24 = arith.addi %21, %23 : vector<32x1xi32>
    %c1_i32 = arith.constant 1 : i32
    %25 = vector.broadcast %c1_i32 : i32 to vector<32x1xi32>
    %26 = arith.addi %24, %25 : vector<32x1xi32>
    %27 = arith.sitofp %26 : vector<32x1xi32> to vector<32x1xf32>
    %cst_13 = arith.constant 1.000000e+00 : f32
    %28 = vector.broadcast %cst_13 : f32 to vector<32x1xf32>
    %29 = arith.divf %28, %27 : vector<32x1xf32>
    %30 = vector.broadcast %29 : vector<32x1xf32> to vector<32x128xf32>
    %31 = arith.mulf %12, %30 : vector<32x128xf32>
    %32 = vector.broadcast %29 : vector<32x1xf32> to vector<32x128xf32>
    %33 = arith.mulf %16, %32 : vector<32x128xf32>
    %34 = arith.mulf %31, %31 : vector<32x128xf32>
    %35 = arith.subf %33, %34 : vector<32x128xf32>
    %cst_14 = arith.constant 0.000000e+00 : f32
    %36 = vector.broadcast %cst_14 : f32 to vector<32x128xf32>
    %37 = arith.maximumf %35, %36 : vector<32x128xf32>
    %38 = arith.subf %4, %31 : vector<32x128xf32>
    %cst_15 = arith.constant 9.99999974E-6 : f32
    %39 = vector.broadcast %cst_15 : f32 to vector<32x128xf32>
    %40 = arith.addf %37, %39 : vector<32x128xf32>
    %41 = math.rsqrt %40 : vector<32x128xf32>
    %42 = arith.mulf %38, %41 : vector<32x128xf32>
    %c0_16 = arith.constant 0 : index
    %c0_17 = arith.constant 0 : index
    %43 = vector.load %arg5[%c0_16, %c0_17] : memref<1x128xf32, #tpu.memory_space<vmem>>, vector<1x128xf32>
    %44 = vector.broadcast %43 : vector<1x128xf32> to vector<32x128xf32>
    %45 = arith.mulf %42, %44 : vector<32x128xf32>
    %c0_18 = arith.constant 0 : index
    %c0_19 = arith.constant 0 : index
    %46 = vector.load %arg6[%c0_18, %c0_19] : memref<1x128xf32, #tpu.memory_space<vmem>>, vector<1x128xf32>
    %47 = vector.broadcast %46 : vector<1x128xf32> to vector<32x128xf32>
    %48 = arith.addf %45, %47 : vector<32x128xf32>
    %c0_20 = arith.constant 0 : index
    %c0_21 = arith.constant 0 : index
    %c0_22 = arith.constant 0 : index
    %49 = vector.load %arg7[%c0_20, %c0_21, %c0_22] : memref<1x32x128xf32, #tpu.memory_space<vmem>>, vector<1x32x128xf32>
    %50 = vector.shape_cast %49 : vector<1x32x128xf32> to vector<32x128xf32>
    %51 = vector.shape_cast %48 : vector<32x128xf32> to vector<1x32x128xf32>
    tpu.vector_store %arg7[%c0_20, %c0_21, %c0_22], %51 {strides = array<i32>} : memref<1x32x128xf32, #tpu.memory_space<vmem>>, vector<1x32x128xf32>,
    return
  }
  func.func @transform_0(%arg0: i32, %arg1: i32, %arg2: i32) -> (i32, i32) {
    %c0_i32 = arith.constant 0 : i32
    %c0_i32_0 = arith.constant 0 : i32
    %c0_i32_1 = arith.constant 0 : i32
    return %c0_i32, %c0_i32_0 : i32, i32
  }
  func.func @transform_1(%arg0: i32, %arg1: i32, %arg2: i32) -> (i32, i32, i32) {
    %c0_i32 = arith.constant 0 : i32
    return %arg0, %arg2, %arg1 : i32, i32, i32
  }
  func.func @transform_2(%arg0: i32, %arg1: i32, %arg2: i32) -> (i32, i32) {
    %c0_i32 = arith.constant 0 : i32
    %c0_i32_0 = arith.constant 0 : i32
    return %c0_i32, %arg1 : i32, i32
  }
  func.func @transform_3(%arg0: i32, %arg1: i32, %arg2: i32) -> (i32, i32) {
    %c0_i32 = arith.constant 0 : i32
    %c0_i32_0 = arith.constant 0 : i32
    return %c0_i32, %arg1 : i32, i32
  }
  func.func @transform_4(%arg0: i32, %arg1: i32, %arg2: i32) -> (i32, i32, i32) {
    %c0_i32 = arith.constant 0 : i32
    return %arg0, %arg2, %arg1 : i32, i32, i32
  }
}

</mosaic_0001>

<llo_original>
// kernel: tpu_custom_call.1
$region0: #{tpu_custom_call.1}
  #allocation0 [shape = 'u32[]', space=smem, size = 0x4, offset = 0x4, fixed_abs, tag = 'smem constant byte address 0x4 - core index']
  #allocation1 [shape = 'u32[72,128]{1,0:T(1,128)}', space=vmem, size = 0x9000, scoped, tag = 'internal scratch']
  #allocation2 [shape = 'f32[1,128]{1,0:T(1,128)}', space=vmem, size = 0x200, scoped, tag = 'scratch operand']
  #allocation3 [shape = 'f32[1,128]{1,0:T(1,128)}', space=vmem, size = 0x200, scoped, tag = 'scratch operand']
  %s0 = inlined_call_operand.hbm [shape: f32[32,32], index: 0, kind: input, shape index: {}]
  %s1 = inlined_call_operand.hbm [shape: f32[2,32,128], index: 1, kind: input, shape index: {}]
  %s2 = inlined_call_operand.vmem [shape: f32[1,128], index: 2, kind: input, shape index: {}]
  %s3 = inlined_call_operand.vmem [shape: f32[1,128], index: 3, kind: input, shape index: {}]
  %s4 = inlined_call_operand.hbm [shape: f32[2,32,128], index: 4, kind: output, shape index: {}]
  %s5 = sld [smem:[#allocation0]]
  $region61: #{tpu_custom_call.1} parent=0
    _
  %s7 = ssub.s32 1, %s5
  %s8 = scalar_select 0, %s7, %s5
  $region1: #{tpu_custom_call.1} parent=0
    #allocation4 [shape = 'u8[16384]{0}', space=vmem, size = 0x4000, scoped, tag = 'input window, operand 0, single buffered']
    #allocation5 [shape = 's32[2]{0}', space=sflag, size = 0x8, scoped, tag = 'scoped memory for tpu_custom_call.1']
    #allocation6 [shape = 's32[2]{0}', space=sflag, size = 0x8, scoped, tag = 'scoped memory for tpu_custom_call.1']
    #allocation7 [shape = 'u8[32768]{0}', space=vmem, size = 0x8000, scoped, tag = 'input window, operand 1']
    #allocation8 [shape = 's32[2]{0}', space=sflag, size = 0x8, scoped, tag = 'scoped memory for tpu_custom_call.1']
    #allocation9 [shape = 'u8[32768]{0}', space=vmem, size = 0x8000, scoped, tag = 'output window, operand 0']
    %9 = vsyncpa [#allocation5], 0
    %10 = vsyncpa [#allocation8], 0
    %s11 = scalar_lea.sflag [#allocation8], 1
    %12 = vsyncpa %s11, 0
    %13 = vsyncpa [#allocation6], 0
    %s14 = scalar_lea.sflag [#allocation6], 1
    %15 = vsyncpa %s14, 0
    loop: start=0, step=1, limit=4
    $region2: #{tpu_custom_call.1} parent=1 // loop_pre_header
      _
    $region3: #{tpu_custom_call.1} parent=1 // loop_header
      %s17 = sphi 0, %s21
      %p18 = scmp.ge.s32.totalorder %s17, 4
      %s24 = sphi 0, %s43
      %s25 = sphi 0, %s39
      %s26 = sphi 0, %s35
      %s27 = sphi 0, %s24
      %s28 = sphi 0, %s25
      %s29 = sphi 0, %s26
      %s30 = sphi 0, %s27
      %s31 = sphi 0, %s28
      %s32 = sphi 0, %s29
      %s44 = sphi 0, %s44
      %s46 = sphi 0, %s44
      %s47 = sphi 0, %s46
      %s61 = sphi 0, %s47
      %s71 = sphi 0, %s73
      %s74 = sphi 0, %s71
      %s75 = sphi 0, %s74
      %s91 = sphi 0, %s75
      %s97 = sphi 0, %s99
      %s100 = sphi 0, %s97
      %s101 = sphi 0, %s100
      %s117 = sphi 0, %s101
      %s123 = sphi 0, %s125
      %s126 = sphi 0, %s123
      %s127 = sphi 0, %s126
      %s143 = sphi 0, %s127
      %s153 = sphi 0, %s155
      %s156 = sphi 0, %s153
      %s157 = sphi 0, %s156
      %s173 = sphi 0, %s157
    $region4: #{tpu_custom_call.1} parent=1 // loop_header_branch
      %20 = sbr.rel (%p18) target = $region8
    $region5: #{tpu_custom_call.1} parent=1 // loop_body
      %s22 = ssub.s32 %s17, 1
      %s23 = ssub.s32 %s17, 2
      %s33 = sadd.s32 1, %s26
      %p34 = scmp.ge.s32.totalorder %s33, 1
      %s35 = scalar_select %p34, 0, %s33
      %s36 = sadd.s32 1, %s25
      %s37 = scalar_select %p34, %s36, %s25
      %p38 = scmp.ge.s32.totalorder %s37, 1
      %s39 = scalar_select %p38, 0, %s37
      %s40 = sadd.s32 1, %s24
      %s41 = scalar_select %p38, %s40, %s24
      %p42 = scmp.ge.s32.totalorder %s41, 2
      %s43 = scalar_select %p42, 0, %s41
      %s45 = sadd.s32 %s44, 1
      %p48 = scmp.eq.s32.totalorder %s17, 1
      %p49 = scmp.ne.s32.totalorder %s44, %s46
      %p50 = scmp.eq.s32.totalorder %s17, 0
      %p51 = por %p49, %p50
      %p52 = scmp.ne.s32.totalorder %s44, %s46
      %p53 = scmp.eq.s32.totalorder %s22, 1
      %p54 = por %p52, %p53
      %p55 = scmp.ne.s32.totalorder %s46, %s47
      %p56 = scmp.eq.s32.totalorder %s22, 0
      %p57 = por %p55, %p56
      %p58 = scmp.ne.s32.totalorder %s46, %s47
      %p59 = scmp.eq.s32.totalorder %s23, 1
      %p60 = por %p58, %p59
      %p62 = scmp.ne.s32.totalorder %s47, %s61
      %p63 = scmp.eq.s32.totalorder %s23, 0
      %p64 = por %p62, %p63
      %s65 = ssub.s32 %s24, %s43
      %s66 = ssub.s32 %s26, %s35
      %s67 = sor.u32 %s65, %s66
      %s68 = ssub.s32 %s25, %s39
      %s69 = sor.u32 %s67, %s68
      %p70 = scmp.eq.s32.totalorder %s69, 0
      %s72 = sadd.s32 %s71, 1
      %s73 = scalar_select %p70, %s71, %s72
      %p76 = pneg %p70
      %p77 = scmp.eq.s32.totalorder %s17, 1
      %p78 = por %p76, %p77
      %p79 = scmp.ne.s32.totalorder %s71, %s74
      %p80 = scmp.eq.s32.totalorder %s17, 0
      %p81 = por %p79, %p80
      %p82 = scmp.ne.s32.totalorder %s71, %s74
      %p83 = scmp.eq.s32.totalorder %s22, 1
      %p84 = por %p82, %p83
      %p85 = scmp.ne.s32.totalorder %s74, %s75
      %p86 = scmp.eq.s32.totalorder %s22, 0
      %p87 = por %p85, %p86
      %p88 = scmp.ne.s32.totalorder %s74, %s75
      %p89 = scmp.eq.s32.totalorder %s23, 1
      %p90 = por %p88, %p89
      %p92 = scmp.ne.s32.totalorder %s75, %s91
      %p93 = scmp.eq.s32.totalorder %s23, 0
      %p94 = por %p92, %p93
      %s95 = ssub.s32 %s25, %s39
      %p96 = scmp.eq.s32.totalorder %s95, 0
      %s98 = sadd.s32 %s97, 1
      %s99 = scalar_select %p96, %s97, %s98
      %p102 = pneg %p96
      %p103 = scmp.eq.s32.totalorder %s17, 1
      %p104 = por %p102, %p103
      %p105 = scmp.ne.s32.totalorder %s97, %s100
      %p106 = scmp.eq.s32.totalorder %s17, 0
      %p107 = por %p105, %p106
      %p108 = scmp.ne.s32.totalorder %s97, %s100
      %p109 = scmp.eq.s32.totalorder %s22, 1
      %p110 = por %p108, %p109
      %p111 = scmp.ne.s32.totalorder %s100, %s101
      %p112 = scmp.eq.s32.totalorder %s22, 0
      %p113 = por %p111, %p112
      %p114 = scmp.ne.s32.totalorder %s100, %s101
      %p115 = scmp.eq.s32.totalorder %s23, 1
      %p116 = por %p114, %p115
      %p118 = scmp.ne.s32.totalorder %s101, %s117
      %p119 = scmp.eq.s32.totalorder %s23, 0
      %p120 = por %p118, %p119
      %s121 = ssub.s32 %s25, %s39
      %p122 = scmp.eq.s32.totalorder %s121, 0
      %s124 = sadd.s32 %s123, 1
      %s125 = scalar_select %p122, %s123, %s124
      %p128 = pneg %p122
      %p129 = scmp.eq.s32.totalorder %s17, 1
      %p130 = por %p128, %p129
      %p131 = scmp.ne.s32.totalorder %s123, %s126
      %p132 = scmp.eq.s32.totalorder %s17, 0
      %p133 = por %p131, %p132
      %p134 = scmp.ne.s32.totalorder %s123, %s126
      %p135 = scmp.eq.s32.totalorder %s22, 1
      %p136 = por %p134, %p135
      %p137 = scmp.ne.s32.totalorder %s126, %s127
      %p138 = scmp.eq.s32.totalorder %s22, 0
      %p139 = por %p137, %p138
      %p140 = scmp.ne.s32.totalorder %s126, %s127
      %p141 = scmp.eq.s32.totalorder %s23, 1
      %p142 = por %p140, %p141
      %p144 = scmp.ne.s32.totalorder %s127, %s143
      %p145 = scmp.eq.s32.totalorder %s23, 0
      %p146 = por %p144, %p145
      %s147 = ssub.s32 %s24, %s43
      %s148 = ssub.s32 %s26, %s35
      %s149 = sor.u32 %s147, %s148
      %s150 = ssub.s32 %s25, %s39
      %s151 = sor.u32 %s149, %s150
      %p152 = scmp.eq.s32.totalorder %s151, 0
      %s154 = sadd.s32 %s153, 1
      %s155 = scalar_select %p152, %s153, %s154
      %p158 = pneg %p152
      %p159 = scmp.eq.s32.totalorder %s17, 1
      %p160 = por %p158, %p159
      %p161 = scmp.ne.s32.totalorder %s153, %s156
      %p162 = scmp.eq.s32.totalorder %s17, 0
      %p163 = por %p161, %p162
      %p164 = scmp.ne.s32.totalorder %s153, %s156
      %p165 = scmp.eq.s32.totalorder %s22, 1
      %p166 = por %p164, %p165
      %p167 = scmp.ne.s32.totalorder %s156, %s157
      %p168 = scmp.eq.s32.totalorder %s22, 0
      %p169 = por %p167, %p168
      %p170 = scmp.ne.s32.totalorder %s156, %s157
      %p171 = scmp.eq.s32.totalorder %s23, 1
      %p172 = por %p170, %p171
      %p174 = scmp.ne.s32.totalorder %s157, %s173
      %p175 = scmp.eq.s32.totalorder %s23, 0
      %p176 = por %p174, %p175
      %p177 = scmp.le.s32.totalorder 1, %s17
      %p178 = scmp.lt.s32.totalorder %s17, 3
      %p179 = pnand %p177, %p178
      %p180 = pneg %p179
      // Predicated region
      $region9: #{tpu_custom_call.1} parent=5 // pred_check
        _
      $region10: #{tpu_custom_call.1} parent=5 // pred_check_branch
        %182 = sbr.rel (%p179) target = $region12
      $region11: #{tpu_custom_call.1} parent=5 // pred_region
        %s183 = ssub.s32 %s17, 1
        // Predicated region
        $region13: #{tpu_custom_call.1} parent=11 // pred_check
          %p184 = pneg %p57
        $region14: #{tpu_custom_call.1} parent=11 // pred_check_branch
          %186 = sbr.rel (%p184) target = $region16
        $region15: #{tpu_custom_call.1} parent=11 // pred_region
          %188 = vsyncadd [#allocation5], 0
          %s189 = sshll.u32 %s0, 4
          %s190 = int_to_ptr.hbm [resolvable:$true] %s189
          %s191 = sshll.u32 [#allocation4], 4
          %s192 = int_to_ptr.vmem [resolvable:$true] %s191
          %197 = dma.hbm_to_vmem [thread:$0]  %s190, 512, %s192, [#allocation5], 128, 128, 8
        $region16: #{tpu_custom_call.1} parent=11 // pred_fallthru
          _
        // Predicated region
        $region17: #{tpu_custom_call.1} parent=11 // pred_check
          %p198 = pneg %p113
        $region18: #{tpu_custom_call.1} parent=11 // pred_check_branch
          %200 = sbr.rel (%p198) target = $region20
        $region19: #{tpu_custom_call.1} parent=11 // pred_region
          %p201 = scmp.lt.s32.totalorder %s28, 0
          %s202 = scalar_select %p201, %s28, 0
          %s203 = scalar_lea.vmem %s2, %s202
        $region20: #{tpu_custom_call.1} parent=11 // pred_fallthru
          _
        // Predicated region
        $region21: #{tpu_custom_call.1} parent=11 // pred_check
          %p204 = pneg %p139
        $region22: #{tpu_custom_call.1} parent=11 // pred_check_branch
          %206 = sbr.rel (%p204) target = $region24
        $region23: #{tpu_custom_call.1} parent=11 // pred_region
          %p207 = scmp.lt.s32.totalorder %s28, 0
          %s208 = scalar_select %p207, %s28, 0
          %s209 = scalar_lea.vmem %s3, %s208
        $region24: #{tpu_custom_call.1} parent=11 // pred_fallthru
          _
      $region12: #{tpu_custom_call.1} parent=5 // pred_fallthru
        _
      %p210 = scmp.lt.s32.totalorder %s17, 2
      // Predicated region
      $region25: #{tpu_custom_call.1} parent=5 // pred_check
        %p211 = pneg %p210
      $region26: #{tpu_custom_call.1} parent=5 // pred_check_branch
        %213 = sbr.rel (%p211) target = $region28
      $region27: #{tpu_custom_call.1} parent=5 // pred_region
        // Predicated region
        $region29: #{tpu_custom_call.1} parent=27 // pred_check
          %p214 = pneg %p81
        $region30: #{tpu_custom_call.1} parent=27 // pred_check_branch
          %216 = sbr.rel (%p214) target = $region32
        $region31: #{tpu_custom_call.1} parent=27 // pred_region
          %s217 = sand.u32 %s71, 1
          %s218 = scalar_lea.sflag [#allocation8], %s217
          %s219 = sand.u32 %s71, 1
          %s220 = smul.addr %s219, 32
          %s221 = scalar_lea.vmem [#allocation7], %s220
          %s222 = smul.u32 4, %s26
          %224 = vsyncadd %s218, 0
          %s225 = sadd.s32 %s25, %s222
          %s226 = smul.addr %s24, 4
          %s227 = sadd.s32 %s225, %s226
          %s228 = smul.addr %s227, 8
          %s229 = scalar_lea.hbm %s1, %s228
          %s230 = sshll.u32 %s229, 4
          %s231 = int_to_ptr.hbm [resolvable:$true] %s230
          %s232 = sshll.u32 %s221, 4
          %s233 = int_to_ptr.vmem [resolvable:$true] %s232
          %238 = dma.hbm_to_vmem [thread:$0]  %s231, 512, %s233, %s218, 128, 128, 8
        $region32: #{tpu_custom_call.1} parent=27 // pred_fallthru
          _
      $region28: #{tpu_custom_call.1} parent=5 // pred_fallthru
        _
      %p239 = scmp.le.s32.totalorder 1, %s17
      %p240 = scmp.lt.s32.totalorder %s17, 3
      %p241 = pnand %p239, %p240
      %p242 = pneg %p241
      // Predicated region
      $region33: #{tpu_custom_call.1} parent=5 // pred_check
        _
      $region34: #{tpu_custom_call.1} parent=5 // pred_check_branch
        %244 = sbr.rel (%p241) target = $region36
      $region35: #{tpu_custom_call.1} parent=5 // pred_region
        %s245 = ssub.s32 %s17, 1
        // Predicated region
        $region37: #{tpu_custom_call.1} parent=35 // pred_check
          %p246 = pneg %p57
        $region38: #{tpu_custom_call.1} parent=35 // pred_check_branch
          %248 = sbr.rel (%p246) target = $region40
        $region39: #{tpu_custom_call.1} parent=35 // pred_region
          %250 = dma.done [#allocation5], 512
        $region40: #{tpu_custom_call.1} parent=35 // pred_fallthru
          _
        %s251 = sand.u32 %s74, 1
        %s252 = scalar_lea.sflag [#allocation8], %s251
        %s253 = sand.u32 %s74, 1
        %s254 = smul.addr %s253, 32
        %s255 = scalar_lea.vmem [#allocation7], %s254
        // Predicated region
        $region41: #{tpu_custom_call.1} parent=35 // pred_check
          %p256 = pneg %p87
        $region42: #{tpu_custom_call.1} parent=35 // pred_check_branch
          %258 = sbr.rel (%p256) target = $region44
        $region43: #{tpu_custom_call.1} parent=35 // pred_region
          %260 = dma.done %s252, 512
        $region44: #{tpu_custom_call.1} parent=35 // pred_fallthru
          _
        %p261 = pneg %p57
        %p262 = pneg %p54
        %s263 = sand.u32 %s74, 1
        %s264 = scalar_lea.sflag [#allocation8], %s263
        %s265 = sand.u32 %s74, 1
        %s266 = smul.addr %s265, 32
        %s267 = scalar_lea.vmem [#allocation7], %s266
        %p268 = pneg %p87
        %p269 = pneg %p84
        %p270 = scmp.lt.s32.totalorder %s28, 0
        %s271 = scalar_select %p270, %s28, 0
        %s272 = scalar_lea.vmem %s2, %s271
        %p273 = pneg %p113
        %p274 = pneg %p110
        %p275 = scmp.lt.s32.totalorder %s28, 0
        %s276 = scalar_select %p275, %s28, 0
        %s277 = scalar_lea.vmem %s3, %s276
        %p278 = pneg %p139
        %p279 = pneg %p136
        %p280 = pneg %p169
        %p281 = pneg %p166
        %s282 = sand.u32 %s156, 1
        %s283 = scalar_lea.sflag [#allocation6], %s282
        %s284 = sand.u32 %s156, 1
        %s285 = smul.addr %s284, 32
        %s286 = scalar_lea.vmem [#allocation9], %s285
        %s287 = smul.u32 4, %s29
        %p288 = scmp.lt.s32.totalorder %s28, 0
        %s289 = scalar_select %p288, %s28, 0
        %s290 = scalar_lea.vmem %s2, %s289
        %p291 = scmp.lt.s32.totalorder %s28, 0
        %s292 = scalar_select %p291, %s28, 0
        %s293 = scalar_lea.vmem %s3, %s292
        %s294 = smul.u32 4, %s29
        %p295 = scmp.eq.s32.totalorder %s29, 0
        // Predicated region
        $region45: #{tpu_custom_call.1} parent=35 // pred_check
          %p296 = pneg %p295
        $region46: #{tpu_custom_call.1} parent=35 // pred_check_branch
          %298 = sbr.rel (%p296) target = $region48
        $region47: #{tpu_custom_call.1} parent=35 // pred_region
          %299 = vst [vmem:[#allocation2] sm:$0x1] 0.0
          %300 = vst [vmem:[#allocation3] sm:$0x1] 0.0
        $region48: #{tpu_custom_call.1} parent=35 // pred_fallthru
          _
        %v301 = vld [vmem:[%s255] sm:$0xff]
        %v302 = vld [vmem:[%s255 + $0x8] sm:$0xff]
        %v303 = vld [vmem:[%s255 + $0x10] sm:$0xff]
        %v304 = vld [vmem:[%s255 + $0x18] sm:$0xff]
        %v305 = vmul.f32 %v301, %v301
        %v306 = vmul.f32 %v302, %v302
        %v307 = vmul.f32 %v303, %v303
        %v308 = vmul.f32 %v304, %v304
        %v309 = vld [vmem:[#allocation4] sm:$0xff]
        %v310 = vld [vmem:[#allocation4 + $0x8] sm:$0xff]
        %v311 = vld [vmem:[#allocation4 + $0x10] sm:$0xff]
        %v312 = vld [vmem:[#allocation4 + $0x18] sm:$0xff]
        %vm313 = vcmask 261120
        %v315 = vsel %vm313, %v309, 0
        %v318 = vsel %vm313, %v310, 0
        %v321 = vsel %vm313, %v311, 0
        %v324 = vsel %vm313, %v312, 0
        %326 = vmatpush.msra.mxu0 0.0
        %327 = vmatpush.msra.mxu0 0.0
        %328 = vmatpush.msra.mxu0 0.0
        %329 = vmatpush.msra.mxu0 0.0
        %330 = vmatpush.msra.mxu0 0.0
        %331 = vmatpush.msra.mxu0 0.0
        %332 = vmatpush.msra.mxu0 0.0
        %333 = vmatpush.msra.mxu0 0.0
        %334 = vmatpush.msra.mxu0 0.0
        %335 = vmatpush.msra.mxu0 0.0
        %336 = vmatpush.msra.mxu0 0.0
        %337 = vmatpush.msra.mxu0 0.0
        %338 = vmatpush.msra.mxu0 %v304
        %339 = vmatpush.msra.mxu0 %v303
        %340 = vmatpush.msra.mxu0 %v302
        %341 = vmatpush.msra.mxu0 %v301
        %342 = vmatmul.f32.gmra.mxu0 %v315
        %v343 = vpop.f32.mrf.mxu0
        %v344 = vadd.f32 0.0, %v343
        %345 = vmatmul.f32.gmra.mxu0 %v318
        %v346 = vpop.f32.mrf.mxu0
        %v347 = vadd.f32 0.0, %v346
        %348 = vmatmul.f32.gmra.mxu0 %v321
        %v349 = vpop.f32.mrf.mxu0
        %v350 = vadd.f32 0.0, %v349
        %351 = vmatmul.f32.gmra.mxu0 %v324
        %v352 = vpop.f32.mrf.mxu0
        %v353 = vadd.f32 0.0, %v352
        %354 = vdwg.mxu0
        %355 = vmatpush.msra.mxu0 0.0
        %356 = vmatpush.msra.mxu0 0.0
        %357 = vmatpush.msra.mxu0 0.0
        %358 = vmatpush.msra.mxu0 0.0
        %359 = vmatpush.msra.mxu0 0.0
        %360 = vmatpush.msra.mxu0 0.0
        %361 = vmatpush.msra.mxu0 0.0
        %362 = vmatpush.msra.mxu0 0.0
        %363 = vmatpush.msra.mxu0 0.0
        %364 = vmatpush.msra.mxu0 0.0
        %365 = vmatpush.msra.mxu0 0.0
        %366 = vmatpush.msra.mxu0 0.0
        %367 = vmatpush.msra.mxu0 %v308
        %368 = vmatpush.msra.mxu0 %v307
        %369 = vmatpush.msra.mxu0 %v306
        %370 = vmatpush.msra.mxu0 %v305
        %371 = vmatmul.f32.gmra.mxu0 %v315
        %v372 = vpop.f32.mrf.mxu0
        %v373 = vadd.f32 0.0, %v372
        %374 = vmatmul.f32.gmra.mxu0 %v318
        %v375 = vpop.f32.mrf.mxu0
        %v376 = vadd.f32 0.0, %v375
        %377 = vmatmul.f32.gmra.mxu0 %v321
        %v378 = vpop.f32.mrf.mxu0
        %v379 = vadd.f32 0.0, %v378
        %380 = vmatmul.f32.gmra.mxu0 %v324
        %v381 = vpop.f32.mrf.mxu0
        %v382 = vadd.f32 0.0, %v381
        %383 = vdwg.mxu0
        %v384 = vld [vmem:[#allocation2] sm:$0x1]
        %v386 = vperm.slane %v384, 0
        %v388 = vadd.f32 %v344, %v386
        %v389 = vadd.f32 %v347, %v386
        %v390 = vadd.f32 %v350, %v386
        %v391 = vadd.f32 %v353, %v386
        %v392 = vld [vmem:[#allocation3] sm:$0x1]
        %v394 = vperm.slane %v392, 0
        %v396 = vadd.f32 %v373, %v394
        %v397 = vadd.f32 %v376, %v394
        %v398 = vadd.f32 %v379, %v394
        %v399 = vadd.f32 %v382, %v394
        %400 = vst [vmem:[#allocation2 - $0x7] sm:$0x80] %v391
        %401 = vst [vmem:[#allocation3 - $0x7] sm:$0x80] %v399
        %v402 = vlaneseq
        %v403 = vshrl.u32 %v402, 7
        %v404 = vadd.s32 %v403, 8
        %v405 = vadd.s32 %v403, 16
        %v406 = vadd.s32 %v403, 24
        %s407 = smul.u32 %s29, 32
        %v408 = vstv %s407
        %v409 = vadd.s32 %v403, %v408
        %v410 = vadd.s32 %v404, %v408
        %v411 = vadd.s32 %v405, %v408
        %v412 = vadd.s32 %v406, %v408
        %v413 = vadd.s32 %v409, 1
        %v414 = vadd.s32 %v410, 1
        %v415 = vadd.s32 %v411, 1
        %v416 = vadd.s32 %v412, 1
        %v417 = vcvt.s32.f32 %v413
        %v418 = vcvt.s32.f32 %v414
        %v419 = vcvt.s32.f32 %v415
        %v420 = vcvt.s32.f32 %v416
        %v421 = vrcp.pop %v417
        %v422 = vmul.f32 %v417, %v421
        %v423 = vsub.f32 1.0, %v422
        %v424 = vmul.f32 %v421, %v423
        %v425 = vadd.f32 %v421, %v424
        %vm426 = vweird.f32 %v417
        %vm427 = vweird.f32 %v421
        %vm428 = vmor %vm426, %vm427
        %v429 = vsel %vm428, %v421, %v425
        %v430 = vand.u32 2147483647, %v417
        %vm431 = vcmp.eq.f32.partialorder %v430, 8.507059e+37
        %v432 = vand.u32 %v417, 2147483648
        %v433 = vor.u32 1.1754944e-38, %v432
        %v434 = vsel %vm431, %v433, %v429
        %v435 = vmul.f32 1.0, %v434
        %v436 = vrcp.pop %v418
        %v437 = vmul.f32 %v418, %v436
        %v438 = vsub.f32 1.0, %v437
        %v439 = vmul.f32 %v436, %v438
        %v440 = vadd.f32 %v436, %v439
        %vm441 = vweird.f32 %v418
        %vm442 = vweird.f32 %v436
        %vm443 = vmor %vm441, %vm442
        %v444 = vsel %vm443, %v436, %v440
        %v445 = vand.u32 2147483647, %v418
        %vm446 = vcmp.eq.f32.partialorder %v445, 8.507059e+37
        %v447 = vand.u32 %v418, 2147483648
        %v448 = vor.u32 1.1754944e-38, %v447
        %v449 = vsel %vm446, %v448, %v444
        %v450 = vmul.f32 1.0, %v449
        %v451 = vrcp.pop %v419
        %v452 = vmul.f32 %v419, %v451
        %v453 = vsub.f32 1.0, %v452
        %v454 = vmul.f32 %v451, %v453
        %v455 = vadd.f32 %v451, %v454
        %vm456 = vweird.f32 %v419
        %vm457 = vweird.f32 %v451
        %vm458 = vmor %vm456, %vm457
        %v459 = vsel %vm458, %v451, %v455
        %v460 = vand.u32 2147483647, %v419
        %vm461 = vcmp.eq.f32.partialorder %v460, 8.507059e+37
        %v462 = vand.u32 %v419, 2147483648
        %v463 = vor.u32 1.1754944e-38, %v462
        %v464 = vsel %vm461, %v463, %v459
        %v465 = vmul.f32 1.0, %v464
        %v466 = vrcp.pop %v420
        %v467 = vmul.f32 %v420, %v466
        %v468 = vsub.f32 1.0, %v467
        %v469 = vmul.f32 %v466, %v468
        %v470 = vadd.f32 %v466, %v469
        %vm471 = vweird.f32 %v420
        %vm472 = vweird.f32 %v466
        %vm473 = vmor %vm471, %vm472
        %v474 = vsel %vm473, %v466, %v470
        %v475 = vand.u32 2147483647, %v420
        %vm476 = vcmp.eq.f32.partialorder %v475, 8.507059e+37
        %v477 = vand.u32 %v420, 2147483648
        %v478 = vor.u32 1.1754944e-38, %v477
        %v479 = vsel %vm476, %v478, %v474
        %v480 = vmul.f32 1.0, %v479
        %v481 = vmul.f32 %v388, %v435
        %v482 = vmul.f32 %v389, %v450
        %v483 = vmul.f32 %v390, %v465
        %v484 = vmul.f32 %v391, %v480
        %v485 = vmul.f32 %v396, %v435
        %v486 = vmul.f32 %v397, %v450
        %v487 = vmul.f32 %v398, %v465
        %v488 = vmul.f32 %v399, %v480
        %v489 = vmul.f32 %v481, %v481
        %v490 = vmul.f32 %v482, %v482
        %v491 = vmul.f32 %v483, %v483
        %v492 = vmul.f32 %v484, %v484
        %v493 = vsub.f32 %v485, %v489
        %v494 = vsub.f32 %v486, %v490
        %v495 = vsub.f32 %v487, %v491
        %v496 = vsub.f32 %v488, %v492
        %v497 = vmax.f32 %v493, 0.0
        %v498 = vmax.f32 %v494, 0.0
        %v499 = vmax.f32 %v495, 0.0
        %v500 = vmax.f32 %v496, 0.0
        %v501 = vsub.f32 %v301, %v481
        %v502 = vsub.f32 %v302, %v482
        %v503 = vsub.f32 %v303, %v483
        %v504 = vsub.f32 %v304, %v484
        %v505 = vadd.f32 %v497, 1e-05
        %v506 = vadd.f32 %v498, 1e-05
        %v507 = vadd.f32 %v499, 1e-05
        %v508 = vadd.f32 %v500, 1e-05
        %v509 = vrsqrt.pop %v505
        %v510 = vmul.f32 %v509, %v505
        %v511 = vmul.f32 %v510, %v509
        %v512 = vmul.f32 0.5, %v511
        %v513 = vsub.f32 1.5, %v512
        %v514 = vmul.f32 %v509, %v513
        %vm515 = vweird.f32 %v505
        %vm516 = vweird.f32 %v509
        %vm517 = vmor %vm515, %vm516
        %v518 = vsel %vm517, %v509, %v514
        %v519 = vrsqrt.pop %v506
        %v520 = vmul.f32 %v519, %v506
        %v521 = vmul.f32 %v520, %v519
        %v522 = vmul.f32 0.5, %v521
        %v523 = vsub.f32 1.5, %v522
        %v524 = vmul.f32 %v519, %v523
        %vm525 = vweird.f32 %v506
        %vm526 = vweird.f32 %v519
        %vm527 = vmor %vm525, %vm526
        %v528 = vsel %vm527, %v519, %v524
        %v529 = vrsqrt.pop %v507
        %v530 = vmul.f32 %v529, %v507
        %v531 = vmul.f32 %v530, %v529
        %v532 = vmul.f32 0.5, %v531
        %v533 = vsub.f32 1.5, %v532
        %v534 = vmul.f32 %v529, %v533
        %vm535 = vweird.f32 %v507
        %vm536 = vweird.f32 %v529
        %vm537 = vmor %vm535, %vm536
        %v538 = vsel %vm537, %v529, %v534
        %v539 = vrsqrt.pop %v508
        %v540 = vmul.f32 %v539, %v508
        %v541 = vmul.f32 %v540, %v539
        %v542 = vmul.f32 0.5, %v541
        %v543 = vsub.f32 1.5, %v542
        %v544 = vmul.f32 %v539, %v543
        %vm545 = vweird.f32 %v508
        %vm546 = vweird.f32 %v539
        %vm547 = vmor %vm545, %vm546
        %v548 = vsel %vm547, %v539, %v544
        %v549 = vmul.f32 %v501, %v518
        %v550 = vmul.f32 %v502, %v528
        %v551 = vmul.f32 %v503, %v538
        %v552 = vmul.f32 %v504, %v548
        %v553 = vld [vmem:[%s290] sm:$0x1]
        %v555 = vperm.slane %v553, 0
        %v557 = vmul.f32 %v549, %v555
        %v558 = vmul.f32 %v550, %v555
        %v559 = vmul.f32 %v551, %v555
        %v560 = vmul.f32 %v552, %v555
        %v561 = vld [vmem:[%s293] sm:$0x1]
        %v563 = vperm.slane %v561, 0
        %v565 = vadd.f32 %v557, %v563
        %v566 = vadd.f32 %v558, %v563
        %v567 = vadd.f32 %v559, %v563
        %v568 = vadd.f32 %v560, %v563
        %569 = vst [vmem:[%s286] sm:$0xff] %v565
        %570 = vst [vmem:[%s286 + $0x8] sm:$0xff] %v566
        %571 = vst [vmem:[%s286 + $0x10] sm:$0xff] %v567
        %572 = vst [vmem:[%s286 + $0x18] sm:$0xff] %v568
        %s573 = sand.u32 %s156, 1
        %s574 = scalar_lea.sflag [#allocation6], %s573
        %s575 = sand.u32 %s156, 1
        %s576 = smul.addr %s575, 32
        %s577 = scalar_lea.vmem [#allocation9], %s576
        // Predicated region
        $region49: #{tpu_custom_call.1} parent=35 // pred_check
          %p578 = pneg %p166
        $region50: #{tpu_custom_call.1} parent=35 // pred_check_branch
          %580 = sbr.rel (%p578) target = $region52
        $region51: #{tpu_custom_call.1} parent=35 // pred_region
          %s581 = smul.u32 4, %s29
          %583 = vsyncadd %s574, 0
          %s584 = sadd.s32 %s28, %s581
          %s585 = smul.addr %s27, 4
          %s586 = sadd.s32 %s584, %s585
          %s587 = smul.addr %s586, 8
          %s588 = scalar_lea.hbm %s4, %s587
          %s589 = sshll.u32 %s577, 4
          %s590 = int_to_ptr.vmem [resolvable:$true] %s589
          %s591 = sshll.u32 %s588, 4
          %s592 = int_to_ptr.hbm [resolvable:$true] %s591
          %597 = dma.vmem_to_hbm [thread:$0]  %s590, 512, %s592, %s574, 128, 128, 8
        $region52: #{tpu_custom_call.1} parent=35 // pred_fallthru
          _
      $region36: #{tpu_custom_call.1} parent=5 // pred_fallthru
        _
      %p598 = scmp.le.s32.totalorder 2, %s17
      // Predicated region
      $region53: #{tpu_custom_call.1} parent=5 // pred_check
        %p599 = pneg %p598
      $region54: #{tpu_custom_call.1} parent=5 // pred_check_branch
        %601 = sbr.rel (%p599) target = $region56
      $region55: #{tpu_custom_call.1} parent=5 // pred_region
        %s602 = ssub.s32 %s17, 2
        // Predicated region
        $region57: #{tpu_custom_call.1} parent=55 // pred_check
          %p603 = pneg %p172
        $region58: #{tpu_custom_call.1} parent=55 // pred_check_branch
          %605 = sbr.rel (%p603) target = $region60
        $region59: #{tpu_custom_call.1} parent=55 // pred_region
          %s606 = sand.u32 %s157, 1
          %s607 = scalar_lea.sflag [#allocation6], %s606
          %s608 = sand.u32 %s157, 1
          %s609 = smul.addr %s608, 32
          %s610 = scalar_lea.vmem [#allocation9], %s609
          %612 = dma.done %s607, 512
        $region60: #{tpu_custom_call.1} parent=55 // pred_fallthru
          _
      $region56: #{tpu_custom_call.1} parent=5 // pred_fallthru
        _
    $region6: #{tpu_custom_call.1} parent=1 // loop_footer
      %s21 = sadd.s32 1, %s17
    $region7: #{tpu_custom_call.1} parent=1 // loop_footer_branch
      %16 = sbr.rel target = $region3
    $region8: #{tpu_custom_call.1} parent=1 // loop_exit
      _
    %613 = vsyncpa [#allocation5], 1
    %s614 = scalar_lea.sflag [#allocation5], 1
    %615 = vsyncpa %s614, 1
    %616 = vsyncpa [#allocation8], 1
    %s617 = scalar_lea.sflag [#allocation8], 1
    %618 = vsyncpa %s617, 1
    %619 = vsyncpa [#allocation6], 1
    %s620 = scalar_lea.sflag [#allocation6], 1
    %621 = vsyncpa %s620, 1

</llo_original>
